<compile_context>
chip_gen: v7x
topology: tpu7x:2x2x1
jax: 0.10.0
libtpu: 0.0.40
codegen_flags: <defaults>
</compile_context>

<pallas_src>
import functools

import jax
import jax.numpy as jnp
from jax.experimental import pallas as pl
from jax.experimental.pallas import tpu as pltpu

EPS = 1e-6  # matches GroupNorm(nn.GroupNorm) subclass default eps=1e-06 in the spec


def _progressive_up_kernel(x_ref, prog_ref, gn_ref, cv_ref, mask_ref, out_ref, *, shifts):
    """One grid step processes a block of `nb` images.

    x_ref:    (nb, Cin,  HW)   channels on sublanes, flattened pixels on lanes
    prog_ref: (nb, Cout, HW)
    gn_ref:   (Cin, Cin+2)     packed [ a_avg | gamma | beta ]; a_avg includes 1/(cpg*HW)
    cv_ref:   (Cout, 9*Cin+1)  packed [ im2col conv weights | bias ]
    mask_ref: (9, HW)          per-tap zero-padding validity masks, f32 {0,1}
    out_ref:  (nb, Cout, HW)
    """
    nb, cin, hw = x_ref.shape
    k9 = 9 * cin

    # Grid-invariant parameters: constant-index BlockSpecs keep these VMEM-resident across
    # grid steps (DMA'd once); loaded once per step here, shared by all nb images.
    a_avg = gn_ref[:, :cin]               # (Cin, Cin)
    gamma = gn_ref[:, cin:cin + 1]        # (Cin, 1)
    beta = gn_ref[:, cin + 1:cin + 2]     # (Cin, 1)
    w = cv_ref[:, :k9]                    # (Cout, 9*Cin)
    bias = cv_ref[:, k9:]                 # (Cout, 1)
    masks = mask_ref[...]                 # (9, HW)

    # Static unroll over the images of this block (nb is small, <= 8).
    for n in range(nb):
        x = x_ref[n].astype(jnp.float32)        # (Cin, HW)
        prog = prog_ref[n].astype(jnp.float32)  # (Cout, HW)

        # --- GroupNorm (two-pass): lane-reduce FIRST, then tiny (Cin,Cin)@(Cin,1) dots.
        s = jnp.sum(x, axis=1, keepdims=True)                            # (Cin, 1)
        mean_c = jnp.dot(a_avg, s, preferred_element_type=jnp.float32)   # per-channel group mean
        xc = x - mean_c
        sq = jnp.sum(xc * xc, axis=1, keepdims=True)                     # (Cin, 1)
        var_c = jnp.dot(a_avg, sq, preferred_element_type=jnp.float32)   # per-channel group var
        act = xc * jax.lax.rsqrt(var_c + EPS) * gamma + beta

        # --- SiLU
        act = act * jax.nn.sigmoid(act)

        # --- 3x3 conv, padding 1: im2col via lane rolls + precomputed boundary masks.
        # NOTE: the sublane-axis concat is copy-free only when Cin is a multiple of 8 (f32
        # sublane pack); otherwise switch to K-accumulated per-tap (Cout,Cin)@(Cin,HW) dots.
        parts = []
        for k, shift in enumerate(shifts):
            if shift == 0:
                tap = act
            else:
                tap = pltpu.roll(act, (-shift) % hw, axis=1) * masks[k:k + 1, :]
            parts.append(tap)
        im2col = jnp.concatenate(parts, axis=0)                          # (9*Cin, HW)

        conv = jnp.dot(w, im2col, preferred_element_type=jnp.float32)    # (Cout, HW)
        out_ref[n] = (conv + bias + prog).astype(out_ref.dtype)


def _pick_batch_block(n, batch_block):
    """Largest nb <= batch_block dividing n, preferring >= 2 grid steps (feeds both v7x TCs)."""
    target_steps = 2 if n >= 2 else 1
    nb = max(1, min(batch_block, n // target_steps))
    while n % nb:
        nb -= 1
    return nb


def progressive_up(x_nchw, prog_nchw, gamma, beta, conv_w_oihw, conv_b, num_groups,
                   *, batch_block=8, out_dtype=None, core_parallel=False):
    """ProgressiveUp forward. Inputs/outputs are NCHW (PyTorch convention).

    x/prog may be bf16 (recommended when HBM-bandwidth bound); compute is f32 inside and the
    output dtype follows x (or `out_dtype`). On v7x pass core_parallel=True to shard the batch
    grid axis across both TensorCores.
    """
    N, Cin, H, W = x_nchw.shape
    Cout = conv_w_oihw.shape[0]
    HW = H * W
    if Cin % num_groups:
        raise ValueError(f"Cin={Cin} must be divisible by num_groups={num_groups}")
    if HW % 128:
        raise ValueError("roll-based im2col requires H*W to be a multiple of 128")
    cpg = Cin // num_groups
    out_dtype = x_nchw.dtype if out_dtype is None else out_dtype
    nb = _pick_batch_block(N, batch_block)

    # NCHW -> (N, C, H*W): contiguous reshape only (no wrapper HBM transpose pass).
    x = x_nchw.reshape(N, Cin, HW)
    prog = prog_nchw.reshape(N, Cout, HW)

    # Packed GroupNorm params (one constant-index BlockSpec): [ a_avg | gamma | beta ].
    cidx = jnp.arange(Cin)
    a_avg = jnp.where((cidx[:, None] // cpg) == (cidx[None, :] // cpg),
                      1.0 / (cpg * HW), 0.0).astype(jnp.float32)
    gn_p = jnp.concatenate([a_avg,
                            gamma.reshape(Cin, 1).astype(jnp.float32),
                            beta.reshape(Cin, 1).astype(jnp.float32)], axis=1)

    # Packed conv params: [ w_im2col | bias ]; w column index = (kh*3+kw)*Cin + ci.
    w2 = jnp.transpose(conv_w_oihw, (0, 2, 3, 1)).reshape(Cout, 9 * Cin).astype(jnp.float32)
    cv_p = jnp.concatenate([w2, conv_b.reshape(Cout, 1).astype(jnp.float32)], axis=1)

    # Per-tap boundary masks and lane-roll shifts (grid-invariant; built once here).
    hh = jnp.arange(HW) // W
    ww = jnp.arange(HW) % W
    rows, shifts = [], []
    for dh in (-1, 0, 1):
        for dw in (-1, 0, 1):
            valid = jnp.ones((HW,), jnp.bool_)
            if dh == -1:
                valid = valid & (hh >= 1)
            elif dh == 1:
                valid = valid & (hh < H - 1)
            if dw == -1:
                valid = valid & (ww >= 1)
            elif dw == 1:
                valid = valid & (ww < W - 1)
            rows.append(valid)
            shifts.append(dh * W + dw)
    masks = jnp.stack(rows).astype(jnp.float32)          # (9, HW)

    kernel = functools.partial(_progressive_up_kernel, shifts=tuple(shifts))
    sem = pltpu.CORE_PARALLEL if core_parallel else pltpu.PARALLEL

    # TODO(synk): at production H*W*C, strip-tile H with a 1-row halo (the current hh-based
    # masks must then be replaced by real halo rows from neighbouring strips), size strips so
    # double-buffered blocks + the 9x f32 im2col temp fit v7x's 64 MiB VMEM (or drop the
    # im2col concat for K-accumulated per-tap dots), and set vmem_limit_bytes explicitly.
    out = pl.pallas_call(
        kernel,
        out_shape=jax.ShapeDtypeStruct((N, Cout, HW), out_dtype),
        grid_spec=pltpu.PrefetchScalarGridSpec(
            num_scalar_prefetch=0,
            grid=(N // nb,),  # nb images per step amortizes the fixed per-grid-step cost
            in_specs=[
                pl.BlockSpec((nb, Cin, HW), lambda i: (i, 0, 0)),
                pl.BlockSpec((nb, Cout, HW), lambda i: (i, 0, 0)),
                pl.BlockSpec((Cin, Cin + 2), lambda i: (0, 0)),       # resident across steps
                pl.BlockSpec((Cout, 9 * Cin + 1), lambda i: (0, 0)),  # resident across steps
                pl.BlockSpec((9, HW), lambda i: (0, 0)),              # resident across steps
            ],
            out_specs=pl.BlockSpec((nb, Cout, HW), lambda i: (i, 0, 0)),
        ),
        compiler_params=pltpu.CompilerParams(dimension_semantics=(sem,)),
    )(x, prog, gn_p, cv_p, masks)

    # (N, Cout, H*W) -> NCHW: contiguous reshape only.
    return out.reshape(N, Cout, H, W)


def progressive_up_reference(x, prog, gamma, beta, W_oihw, b, num_groups):
    """Pure-JAX reference mirroring the PyTorch module."""
    N, C, H, Wd = x.shape
    xg = x.reshape(N, num_groups, C // num_groups, H, Wd)
    mean = xg.mean(axis=(2, 3, 4), keepdims=True)
    var = ((xg - mean) ** 2).mean(axis=(2, 3, 4), keepdims=True)
    hn = ((xg - mean) / jnp.sqrt(var + EPS)).reshape(N, C, H, Wd)
    hn = hn * gamma[None, :, None, None] + beta[None, :, None, None]
    hs = hn * jax.nn.sigmoid(hn)
    conv = jax.lax.conv_general_dilated(
        hs, W_oihw, window_strides=(1, 1), padding="SAME",
        dimension_numbers=("NCHW", "OIHW", "NCHW"))
    return conv + b[None, :, None, None] + prog


if __name__ == "__main__":
    # Small shapes consistent with ProgressiveUp(in_channels=8, out_channels=4).
    # N=4 exercises the batch-blocked grid (nb=2 images per step, 2 grid steps).
    N, Cin, Cout, H, W = 4, 8, 4, 16, 16
    num_groups = min(32, Cin // 4)   # GroupNorm subclass default: min(32, C // 4)

    key = jax.random.PRNGKey(0)
    kx, kp, kg, kb, kw, kc = jax.random.split(key, 6)
    x = jax.random.normal(kx, (N, Cin, H, W), jnp.float32)
    prog = jax.random.normal(kp, (N, Cout, H, W), jnp.float32)
    gamma = 1.0 + 0.1 * jax.random.normal(kg, (Cin,), jnp.float32)
    beta = 0.1 * jax.random.normal(kb, (Cin,), jnp.float32)
    fan_in = Cin * 3 * 3
    conv_w = jax.random.normal(kw, (Cout, Cin, 3, 3), jnp.float32) / jnp.sqrt(fan_in)
    conv_b = 0.01 * jax.random.normal(kc, (Cout,), jnp.float32)

    # --- f32 path ---
    out = progressive_up(x, prog, gamma, beta, conv_w, conv_b, num_groups)
    out = jax.block_until_ready(out)
    ref = progressive_up_reference(x, prog, gamma, beta, conv_w, conv_b, num_groups)
    ref = jax.block_until_ready(ref)
    assert out.shape == (N, Cout, H, W)
    assert jnp.allclose(out, ref, atol=1e-4, rtol=1e-4), float(jnp.max(jnp.abs(out - ref)))

    # --- bf16 I/O path (halves HBM traffic; compute stays f32 inside the kernel) ---
    x_bf = x.astype(jnp.bfloat16)
    prog_bf = prog.astype(jnp.bfloat16)
    out_bf = progressive_up(x_bf, prog_bf, gamma, beta, conv_w, conv_b, num_groups)
    out_bf = jax.block_until_ready(out_bf)
    assert out_bf.dtype == jnp.bfloat16
    ref_bf = progressive_up_reference(x_bf.astype(jnp.float32), prog_bf.astype(jnp.float32),
                                      gamma, beta, conv_w, conv_b, num_groups)
    assert jnp.allclose(out_bf.astype(jnp.float32), ref_bf, atol=5e-2, rtol=5e-2), \
        float(jnp.max(jnp.abs(out_bf.astype(jnp.float32) - ref_bf)))

    print("KERNEL_OK")
</pallas_src>

<mosaic_0001>
module attributes {stable_mosaic.version = 11 : i64} {
  func.func @_progressive_up_kernel(%arg0: i32, %arg1: memref<2x8x256xf32, #tpu.memory_space<vmem>>, %arg2: memref<2x4x256xf32, #tpu.memory_space<vmem>>, %arg3: memref<8x10xf32, #tpu.memory_space<vmem>>, %arg4: memref<4x73xf32, #tpu.memory_space<vmem>>, %arg5: memref<9x256xf32, #tpu.memory_space<vmem>>, %arg6: memref<2x4x256xf32, #tpu.memory_space<vmem>>) attributes {dimension_semantics = [#tpu.dimension_semantics<parallel>], iteration_bounds = array<i64: 2>, scalar_prefetch = 0 : i64, scratch_operands = 0 : i64, tpu.core_type = #tpu.core_type<tc>, window_params = [{transform_indices = @transform_0, window_bounds = array<i64: 2, 8, 256>}, {transform_indices = @transform_1, window_bounds = array<i64: 2, 4, 256>}, {pipeline_mode = #tpu.pipeline_mode<synchronous>, transform_indices = @transform_2, window_bounds = array<i64: 8, 10>}, {pipeline_mode = #tpu.pipeline_mode<synchronous>, transform_indices = @transform_3, window_bounds = array<i64: 4, 73>}, {pipeline_mode = #tpu.pipeline_mode<synchronous>, transform_indices = @transform_4, window_bounds = array<i64: 9, 256>}, {transform_indices = @transform_5, window_bounds = array<i64: 2, 4, 256>}]} {
    %c0 = arith.constant 0 : index
    %c0_0 = arith.constant 0 : index
    %0 = vector.load %arg3[%c0, %c0_0] : memref<8x10xf32, #tpu.memory_space<vmem>>, vector<8x8xf32>
    %c0_1 = arith.constant 0 : index
    %c8 = arith.constant 8 : index
    %1 = vector.load %arg3[%c0_1, %c8] : memref<8x10xf32, #tpu.memory_space<vmem>>, vector<8x1xf32>
    %c0_2 = arith.constant 0 : index
    %c9 = arith.constant 9 : index
    %2 = vector.load %arg3[%c0_2, %c9] : memref<8x10xf32, #tpu.memory_space<vmem>>, vector<8x1xf32>
    %c0_3 = arith.constant 0 : index
    %c0_4 = arith.constant 0 : index
    %3 = vector.load %arg4[%c0_3, %c0_4] : memref<4x73xf32, #tpu.memory_space<vmem>>, vector<4x72xf32>
    %c0_5 = arith.constant 0 : index
    %c72 = arith.constant 72 : index
    %4 = vector.load %arg4[%c0_5, %c72] : memref<4x73xf32, #tpu.memory_space<vmem>>, vector<4x1xf32>
    %c0_6 = arith.constant 0 : index
    %c0_7 = arith.constant 0 : index
    %5 = vector.load %arg5[%c0_6, %c0_7] : memref<9x256xf32, #tpu.memory_space<vmem>>, vector<9x256xf32>
    %c0_8 = arith.constant 0 : index
    %c0_9 = arith.constant 0 : index
    %c0_10 = arith.constant 0 : index
    %6 = vector.load %arg1[%c0_8, %c0_9, %c0_10] : memref<2x8x256xf32, #tpu.memory_space<vmem>>, vector<1x8x256xf32>
    %7 = vector.shape_cast %6 : vector<1x8x256xf32> to vector<8x256xf32>
    %c0_11 = arith.constant 0 : index
    %c0_12 = arith.constant 0 : index
    %c0_13 = arith.constant 0 : index
    %8 = vector.load %arg2[%c0_11, %c0_12, %c0_13] : memref<2x4x256xf32, #tpu.memory_space<vmem>>, vector<1x4x256xf32>
    %9 = vector.shape_cast %8 : vector<1x4x256xf32> to vector<4x256xf32>
    %cst = arith.constant dense<0.000000e+00> : vector<8xf32>
    %10 = vector.multi_reduction <add>, %7, %cst [1] : vector<8x256xf32> to vector<8xf32>
    %11 = vector.shape_cast %10 : vector<8xf32> to vector<8x1xf32>
    %cst_14 = arith.constant dense<0.000000e+00> : vector<8x1xf32>
    %12 = tpu.matmul %0, %11, %cst_14 {dimension_numbers = #tpu.dot_dimension_numbers<[1], [0], [0], [1], [0, 0, 1, 1], [], []>} : vector<8x8xf32>, vector<8x1xf32>, vector<8x1xf32> -> vector<8x1xf32>
    %13 = vector.broadcast %12 : vector<8x1xf32> to vector<8x256xf32>
    %14 = arith.subf %7, %13 : vector<8x256xf32>
    %15 = arith.mulf %14, %14 : vector<8x256xf32>
    %cst_15 = arith.constant dense<0.000000e+00> : vector<8xf32>
    %16 = vector.multi_reduction <add>, %15, %cst_15 [1] : vector<8x256xf32> to vector<8xf32>
    %17 = vector.shape_cast %16 : vector<8xf32> to vector<8x1xf32>
    %cst_16 = arith.constant dense<0.000000e+00> : vector<8x1xf32>
    %18 = tpu.matmul %0, %17, %cst_16 {dimension_numbers = #tpu.dot_dimension_numbers<[1], [0], [0], [1], [0, 0, 1, 1], [], []>} : vector<8x8xf32>, vector<8x1xf32>, vector<8x1xf32> -> vector<8x1xf32>
    %cst_17 = arith.constant 9.99999997E-7 : f32
    %19 = vector.broadcast %cst_17 : f32 to vector<8x1xf32>
    %20 = arith.addf %18, %19 : vector<8x1xf32>
    %21 = math.rsqrt %20 : vector<8x1xf32>
    %22 = vector.broadcast %21 : vector<8x1xf32> to vector<8x256xf32>
    %23 = arith.mulf %14, %22 : vector<8x256xf32>
    %24 = vector.broadcast %1 : vector<8x1xf32> to vector<8x256xf32>
    %25 = arith.mulf %23, %24 : vector<8x256xf32>
    %26 = vector.broadcast %2 : vector<8x1xf32> to vector<8x256xf32>
    %27 = arith.addf %25, %26 : vector<8x256xf32>
    %28 = arith.negf %27 : vector<8x256xf32>
    %29 = math.exp %28 : vector<8x256xf32>
    %cst_18 = arith.constant 1.000000e+00 : f32
    %30 = vector.broadcast %cst_18 : f32 to vector<8x256xf32>
    %31 = arith.addf %30, %29 : vector<8x256xf32>
    %32 = arith.divf %30, %31 : vector<8x256xf32>
    %33 = arith.mulf %27, %32 : vector<8x256xf32>
    %c17_i32 = arith.constant 17 : i32
    %34 = tpu.dynamic_rotate %33 by %c17_i32 dim 1 : vector<8x256xf32>, i32 -> vector<8x256xf32>
    %35 = vector.extract_strided_slice %5 {offsets = [0, 0], sizes = [1, 256], strides = [1, 1]} : vector<9x256xf32> to vector<1x256xf32>
    %36 = vector.broadcast %35 : vector<1x256xf32> to vector<8x256xf32>
    %37 = arith.mulf %34, %36 : vector<8x256xf32>
    %c16_i32 = arith.constant 16 : i32
    %38 = tpu.dynamic_rotate %33 by %c16_i32 dim 1 : vector<8x256xf32>, i32 -> vector<8x256xf32>
    %39 = vector.extract_strided_slice %5 {offsets = [1, 0], sizes = [1, 256], strides = [1, 1]} : vector<9x256xf32> to vector<1x256xf32>
    %40 = vector.broadcast %39 : vector<1x256xf32> to vector<8x256xf32>
    %41 = arith.mulf %38, %40 : vector<8x256xf32>
    %c15_i32 = arith.constant 15 : i32
    %42 = tpu.dynamic_rotate %33 by %c15_i32 dim 1 : vector<8x256xf32>, i32 -> vector<8x256xf32>
    %43 = vector.extract_strided_slice %5 {offsets = [2, 0], sizes = [1, 256], strides = [1, 1]} : vector<9x256xf32> to vector<1x256xf32>
    %44 = vector.broadcast %43 : vector<1x256xf32> to vector<8x256xf32>
    %45 = arith.mulf %42, %44 : vector<8x256xf32>
    %c1_i32 = arith.constant 1 : i32
    %46 = tpu.dynamic_rotate %33 by %c1_i32 dim 1 : vector<8x256xf32>, i32 -> vector<8x256xf32>
    %47 = vector.extract_strided_slice %5 {offsets = [3, 0], sizes = [1, 256], strides = [1, 1]} : vector<9x256xf32> to vector<1x256xf32>
    %48 = vector.broadcast %47 : vector<1x256xf32> to vector<8x256xf32>
    %49 = arith.mulf %46, %48 : vector<8x256xf32>
    %c255_i32 = arith.constant 255 : i32
    %50 = tpu.dynamic_rotate %33 by %c255_i32 dim 1 : vector<8x256xf32>, i32 -> vector<8x256xf32>
    %51 = vector.extract_strided_slice %5 {offsets = [5, 0], sizes = [1, 256], strides = [1, 1]} : vector<9x256xf32> to vector<1x256xf32>
    %52 = vector.broadcast %51 : vector<1x256xf32> to vector<8x256xf32>
    %53 = arith.mulf %50, %52 : vector<8x256xf32>
    %c241_i32 = arith.constant 241 : i32
    %54 = tpu.dynamic_rotate %33 by %c241_i32 dim 1 : vector<8x256xf32>, i32 -> vector<8x256xf32>
    %55 = vector.extract_strided_slice %5 {offsets = [6, 0], sizes = [1, 256], strides = [1, 1]} : vector<9x256xf32> to vector<1x256xf32>
    %56 = vector.broadcast %55 : vector<1x256xf32> to vector<8x256xf32>
    %57 = arith.mulf %54, %56 : vector<8x256xf32>
    %c240_i32 = arith.constant 240 : i32
    %58 = tpu.dynamic_rotate %33 by %c240_i32 dim 1 : vector<8x256xf32>, i32 -> vector<8x256xf32>
    %59 = vector.extract_strided_slice %5 {offsets = [7, 0], sizes = [1, 256], strides = [1, 1]} : vector<9x256xf32> to vector<1x256xf32>
    %60 = vector.broadcast %59 : vector<1x256xf32> to vector<8x256xf32>
    %61 = arith.mulf %58, %60 : vector<8x256xf32>
    %c239_i32 = arith.constant 239 : i32
    %62 = tpu.dynamic_rotate %33 by %c239_i32 dim 1 : vector<8x256xf32>, i32 -> vector<8x256xf32>
    %63 = vector.extract_strided_slice %5 {offsets = [8, 0], sizes = [1, 256], strides = [1, 1]} : vector<9x256xf32> to vector<1x256xf32>
    %64 = vector.broadcast %63 : vector<1x256xf32> to vector<8x256xf32>
    %65 = arith.mulf %62, %64 : vector<8x256xf32>
    %66 = tpu.concatenate %37, %41, %45, %49, %33, %53, %57, %61, %65 in 0 : vector<8x256xf32>, vector<8x256xf32>, vector<8x256xf32>, vector<8x256xf32>, vector<8x256xf32>, vector<8x256xf32>, vector<8x256xf32>, vector<8x256xf32>, vector<8x256xf32> -> vector<72x256xf32>
    %cst_19 = arith.constant dense<0.000000e+00> : vector<4x256xf32>
    %67 = tpu.matmul %3, %66, %cst_19 {dimension_numbers = #tpu.dot_dimension_numbers<[1], [0], [0], [1], [0, 0, 1, 1], [], []>} : vector<4x72xf32>, vector<72x256xf32>, vector<4x256xf32> -> vector<4x256xf32>
    %68 = vector.broadcast %4 : vector<4x1xf32> to vector<4x256xf32>
    %69 = arith.addf %67, %68 : vector<4x256xf32>
    %70 = arith.addf %69, %9 : vector<4x256xf32>
    %c0_20 = arith.constant 0 : index
    %c0_21 = arith.constant 0 : index
    %c0_22 = arith.constant 0 : index
    %71 = vector.load %arg6[%c0_20, %c0_21, %c0_22] : memref<2x4x256xf32, #tpu.memory_space<vmem>>, vector<1x4x256xf32>
    %72 = vector.shape_cast %71 : vector<1x4x256xf32> to vector<4x256xf32>
    %73 = vector.shape_cast %70 : vector<4x256xf32> to vector<1x4x256xf32>
    tpu.vector_store %arg6[%c0_20, %c0_21, %c0_22], %73 {strides = array<i32>} : memref<2x4x256xf32, #tpu.memory_space<vmem>>, vector<1x4x256xf32>,
    %c1 = arith.constant 1 : index
    %c0_23 = arith.constant 0 : index
    %c0_24 = arith.constant 0 : index
    %74 = vector.load %arg1[%c1, %c0_23, %c0_24] : memref<2x8x256xf32, #tpu.memory_space<vmem>>, vector<1x8x256xf32>
    %75 = vector.shape_cast %74 : vector<1x8x256xf32> to vector<8x256xf32>
    %c1_25 = arith.constant 1 : index
    %c0_26 = arith.constant 0 : index
    %c0_27 = arith.constant 0 : index
    %76 = vector.load %arg2[%c1_25, %c0_26, %c0_27] : memref<2x4x256xf32, #tpu.memory_space<vmem>>, vector<1x4x256xf32>
    %77 = vector.shape_cast %76 : vector<1x4x256xf32> to vector<4x256xf32>
    %cst_28 = arith.constant dense<0.000000e+00> : vector<8xf32>
    %78 = vector.multi_reduction <add>, %75, %cst_28 [1] : vector<8x256xf32> to vector<8xf32>
    %79 = vector.shape_cast %78 : vector<8xf32> to vector<8x1xf32>
    %cst_29 = arith.constant dense<0.000000e+00> : vector<8x1xf32>
    %80 = tpu.matmul %0, %79, %cst_29 {dimension_numbers = #tpu.dot_dimension_numbers<[1], [0], [0], [1], [0, 0, 1, 1], [], []>} : vector<8x8xf32>, vector<8x1xf32>, vector<8x1xf32> -> vector<8x1xf32>
    %81 = vector.broadcast %80 : vector<8x1xf32> to vector<8x256xf32>
    %82 = arith.subf %75, %81 : vector<8x256xf32>
    %83 = arith.mulf %82, %82 : vector<8x256xf32>
    %cst_30 = arith.constant dense<0.000000e+00> : vector<8xf32>
    %84 = vector.multi_reduction <add>, %83, %cst_30 [1] : vector<8x256xf32> to vector<8xf32>
    %85 = vector.shape_cast %84 : vector<8xf32> to vector<8x1xf32>
    %cst_31 = arith.constant dense<0.000000e+00> : vector<8x1xf32>
    %86 = tpu.matmul %0, %85, %cst_31 {dimension_numbers = #tpu.dot_dimension_numbers<[1], [0], [0], [1], [0, 0, 1, 1], [], []>} : vector<8x8xf32>, vector<8x1xf32>, vector<8x1xf32> -> vector<8x1xf32>
    %cst_32 = arith.constant 9.99999997E-7 : f32
    %87 = vector.broadcast %cst_32 : f32 to vector<8x1xf32>
    %88 = arith.addf %86, %87 : vector<8x1xf32>
    %89 = math.rsqrt %88 : vector<8x1xf32>
    %90 = vector.broadcast %89 : vector<8x1xf32> to vector<8x256xf32>
    %91 = arith.mulf %82, %90 : vector<8x256xf32>
    %92 = vector.broadcast %1 : vector<8x1xf32> to vector<8x256xf32>
    %93 = arith.mulf %91, %92 : vector<8x256xf32>
    %94 = vector.broadcast %2 : vector<8x1xf32> to vector<8x256xf32>
    %95 = arith.addf %93, %94 : vector<8x256xf32>
    %96 = arith.negf %95 : vector<8x256xf32>
    %97 = math.exp %96 : vector<8x256xf32>
    %cst_33 = arith.constant 1.000000e+00 : f32
    %98 = vector.broadcast %cst_33 : f32 to vector<8x256xf32>
    %99 = arith.addf %98, %97 : vector<8x256xf32>
    %100 = arith.divf %98, %99 : vector<8x256xf32>
    %101 = arith.mulf %95, %100 : vector<8x256xf32>
    %c17_i32_34 = arith.constant 17 : i32
    %102 = tpu.dynamic_rotate %101 by %c17_i32_34 dim 1 : vector<8x256xf32>, i32 -> vector<8x256xf32>
    %103 = vector.extract_strided_slice %5 {offsets = [0, 0], sizes = [1, 256], strides = [1, 1]} : vector<9x256xf32> to vector<1x256xf32>
    %104 = vector.broadcast %103 : vector<1x256xf32> to vector<8x256xf32>
    %105 = arith.mulf %102, %104 : vector<8x256xf32>
    %c16_i32_35 = arith.constant 16 : i32
    %106 = tpu.dynamic_rotate %101 by %c16_i32_35 dim 1 : vector<8x256xf32>, i32 -> vector<8x256xf32>
    %107 = vector.extract_strided_slice %5 {offsets = [1, 0], sizes = [1, 256], strides = [1, 1]} : vector<9x256xf32> to vector<1x256xf32>
    %108 = vector.broadcast %107 : vector<1x256xf32> to vector<8x256xf32>
    %109 = arith.mulf %106, %108 : vector<8x256xf32>
    %c15_i32_36 = arith.constant 15 : i32
    %110 = tpu.dynamic_rotate %101 by %c15_i32_36 dim 1 : vector<8x256xf32>, i32 -> vector<8x256xf32>
    %111 = vector.extract_strided_slice %5 {offsets = [2, 0], sizes = [1, 256], strides = [1, 1]} : vector<9x256xf32> to vector<1x256xf32>
    %112 = vector.broadcast %111 : vector<1x256xf32> to vector<8x256xf32>
    %113 = arith.mulf %110, %112 : vector<8x256xf32>
    %c1_i32_37 = arith.constant 1 : i32
    %114 = tpu.dynamic_rotate %101 by %c1_i32_37 dim 1 : vector<8x256xf32>, i32 -> vector<8x256xf32>
    %115 = vector.extract_strided_slice %5 {offsets = [3, 0], sizes = [1, 256], strides = [1, 1]} : vector<9x256xf32> to vector<1x256xf32>
    %116 = vector.broadcast %115 : vector<1x256xf32> to vector<8x256xf32>
    %117 = arith.mulf %114, %116 : vector<8x256xf32>
    %c255_i32_38 = arith.constant 255 : i32
    %118 = tpu.dynamic_rotate %101 by %c255_i32_38 dim 1 : vector<8x256xf32>, i32 -> vector<8x256xf32>
    %119 = vector.extract_strided_slice %5 {offsets = [5, 0], sizes = [1, 256], strides = [1, 1]} : vector<9x256xf32> to vector<1x256xf32>
    %120 = vector.broadcast %119 : vector<1x256xf32> to vector<8x256xf32>
    %121 = arith.mulf %118, %120 : vector<8x256xf32>
    %c241_i32_39 = arith.constant 241 : i32
    %122 = tpu.dynamic_rotate %101 by %c241_i32_39 dim 1 : vector<8x256xf32>, i32 -> vector<8x256xf32>
    %123 = vector.extract_strided_slice %5 {offsets = [6, 0], sizes = [1, 256], strides = [1, 1]} : vector<9x256xf32> to vector<1x256xf32>
    %124 = vector.broadcast %123 : vector<1x256xf32> to vector<8x256xf32>
    %125 = arith.mulf %122, %124 : vector<8x256xf32>
    %c240_i32_40 = arith.constant 240 : i32
    %126 = tpu.dynamic_rotate %101 by %c240_i32_40 dim 1 : vector<8x256xf32>, i32 -> vector<8x256xf32>
    %127 = vector.extract_strided_slice %5 {offsets = [7, 0], sizes = [1, 256], strides = [1, 1]} : vector<9x256xf32> to vector<1x256xf32>
    %128 = vector.broadcast %127 : vector<1x256xf32> to vector<8x256xf32>
    %129 = arith.mulf %126, %128 : vector<8x256xf32>
    %c239_i32_41 = arith.constant 239 : i32
    %130 = tpu.dynamic_rotate %101 by %c239_i32_41 dim 1 : vector<8x256xf32>, i32 -> vector<8x256xf32>
    %131 = vector.extract_strided_slice %5 {offsets = [8, 0], sizes = [1, 256], strides = [1, 1]} : vector<9x256xf32> to vector<1x256xf32>
    %132 = vector.broadcast %131 : vector<1x256xf32> to vector<8x256xf32>
    %133 = arith.mulf %130, %132 : vector<8x256xf32>
    %134 = tpu.concatenate %105, %109, %113, %117, %101, %121, %125, %129, %133 in 0 : vector<8x256xf32>, vector<8x256xf32>, vector<8x256xf32>, vector<8x256xf32>, vector<8x256xf32>, vector<8x256xf32>, vector<8x256xf32>, vector<8x256xf32>, vector<8x256xf32> -> vector<72x256xf32>
    %cst_42 = arith.constant dense<0.000000e+00> : vector<4x256xf32>
    %135 = tpu.matmul %3, %134, %cst_42 {dimension_numbers = #tpu.dot_dimension_numbers<[1], [0], [0], [1], [0, 0, 1, 1], [], []>} : vector<4x72xf32>, vector<72x256xf32>, vector<4x256xf32> -> vector<4x256xf32>
    %136 = vector.broadcast %4 : vector<4x1xf32> to vector<4x256xf32>
    %137 = arith.addf %135, %136 : vector<4x256xf32>
    %138 = arith.addf %137, %77 : vector<4x256xf32>
    %c1_43 = arith.constant 1 : index
    %c0_44 = arith.constant 0 : index
    %c0_45 = arith.constant 0 : index
    %139 = vector.load %arg6[%c1_43, %c0_44, %c0_45] : memref<2x4x256xf32, #tpu.memory_space<vmem>>, vector<1x4x256xf32>
    %140 = vector.shape_cast %139 : vector<1x4x256xf32> to vector<4x256xf32>
    %141 = vector.shape_cast %138 : vector<4x256xf32> to vector<1x4x256xf32>
    tpu.vector_store %arg6[%c1_43, %c0_44, %c0_45], %141 {strides = array<i32>} : memref<2x4x256xf32, #tpu.memory_space<vmem>>, vector<1x4x256xf32>,
    return
  }
  func.func @transform_0(%arg0: i32) -> (i32, i32, i32) {
    %c0_i32 = arith.constant 0 : i32
    %c0_i32_0 = arith.constant 0 : i32
    %c0_i32_1 = arith.constant 0 : i32
    return %arg0, %c0_i32, %c0_i32_0 : i32, i32, i32
  }
  func.func @transform_1(%arg0: i32) -> (i32, i32, i32) {
    %c0_i32 = arith.constant 0 : i32
    %c0_i32_0 = arith.constant 0 : i32
    %c0_i32_1 = arith.constant 0 : i32
    return %arg0, %c0_i32, %c0_i32_0 : i32, i32, i32
  }
  func.func @transform_2(%arg0: i32) -> (i32, i32) {
    %c0_i32 = arith.constant 0 : i32
    %c0_i32_0 = arith.constant 0 : i32
    %c0_i32_1 = arith.constant 0 : i32
    return %c0_i32, %c0_i32_0 : i32, i32
  }
  func.func @transform_3(%arg0: i32) -> (i32, i32) {
    %c0_i32 = arith.constant 0 : i32
    %c0_i32_0 = arith.constant 0 : i32
    %c0_i32_1 = arith.constant 0 : i32
    return %c0_i32, %c0_i32_0 : i32, i32
  }
  func.func @transform_4(%arg0: i32) -> (i32, i32) {
    %c0_i32 = arith.constant 0 : i32
    %c0_i32_0 = arith.constant 0 : i32
    %c0_i32_1 = arith.constant 0 : i32
    return %c0_i32, %c0_i32_0 : i32, i32
  }
  func.func @transform_5(%arg0: i32) -> (i32, i32, i32) {
    %c0_i32 = arith.constant 0 : i32
    %c0_i32_0 = arith.constant 0 : i32
    %c0_i32_1 = arith.constant 0 : i32
    return %arg0, %c0_i32, %c0_i32_0 : i32, i32, i32
  }
}

</mosaic_0001>

<llo_original>
// kernel: tpu_custom_call.1
$region0: #{tpu_custom_call.1}
  #allocation0 [shape = 'u32[]', space=smem, size = 0x4, offset = 0x4, fixed_abs, tag = 'smem constant byte address 0x4 - core index']
  #allocation1 [shape = 'u32[144,128]{1,0:T(1,128)}', space=vmem, size = 0x12000, scoped, tag = 'internal scratch']
  %s0 = inlined_call_operand.hbm [shape: f32[4,8,256], index: 0, kind: input, shape index: {}]
  %s1 = inlined_call_operand.hbm [shape: f32[4,4,256], index: 1, kind: input, shape index: {}]
  %s2 = inlined_call_operand.hbm [shape: f32[8,10], index: 2, kind: input, shape index: {}]
  %s3 = inlined_call_operand.vmem [shape: f32[4,73], index: 3, kind: input, shape index: {}]
  %s4 = inlined_call_operand.hbm [shape: f32[9,256], index: 4, kind: input, shape index: {}]
  %s5 = inlined_call_operand.hbm [shape: f32[4,4,256], index: 5, kind: output, shape index: {}]
  %s6 = sld [smem:[#allocation0]]
  $region69: #{tpu_custom_call.1} parent=0
    _
  %s8 = ssub.s32 1, %s6
  %s9 = scalar_select 0, %s8, %s6
  $region1: #{tpu_custom_call.1} parent=0
    #allocation2 [shape = 'u8[32768]{0}', space=vmem, size = 0x8000, scoped, tag = 'input window, operand 0']
    #allocation3 [shape = 's32[2]{0}', space=sflag, size = 0x8, scoped, tag = 'scoped memory for tpu_custom_call.1']
    #allocation4 [shape = 's32[2]{0}', space=sflag, size = 0x8, scoped, tag = 'scoped memory for tpu_custom_call.1']
    #allocation5 [shape = 'u8[16384]{0}', space=vmem, size = 0x4000, scoped, tag = 'input window, operand 1']
    #allocation6 [shape = 's32[2]{0}', space=sflag, size = 0x8, scoped, tag = 'scoped memory for tpu_custom_call.1']
    #allocation7 [shape = 'u8[4096]{0}', space=vmem, size = 0x1000, scoped, tag = 'input window, operand 2, single buffered']
    #allocation8 [shape = 'u8[16384]{0}', space=vmem, size = 0x4000, scoped, tag = 'input window, operand 4, single buffered']
    #allocation9 [shape = 's32[1]{0}', space=sflag, size = 0x4, scoped, tag = 'scoped memory for tpu_custom_call.1']
    #allocation10 [shape = 'u8[16384]{0}', space=vmem, size = 0x4000, scoped, tag = 'output window, operand 0']
    %10 = vsyncpa [#allocation3], 0
    %s11 = scalar_lea.sflag [#allocation3], 1
    %12 = vsyncpa %s11, 0
    %13 = vsyncpa [#allocation6], 0
    %s14 = scalar_lea.sflag [#allocation6], 1
    %15 = vsyncpa %s14, 0
    %16 = vsyncpa [#allocation9], 0
    %17 = vsyncpa [#allocation4], 0
    %s18 = scalar_lea.sflag [#allocation4], 1
    %19 = vsyncpa %s18, 0
    loop: start=0, step=1, limit=4
    $region2: #{tpu_custom_call.1} parent=1 // loop_pre_header
      _
    $region3: #{tpu_custom_call.1} parent=1 // loop_header
      %s21 = sphi 0, %s25
      %p22 = scmp.ge.s32.totalorder %s21, 4
      %s31 = sphi 0, %s33
      %s34 = sphi 0, %s31
      %s35 = sphi 0, %s34
      %s51 = sphi 0, %s35
      %s57 = sphi 0, %s59
      %s60 = sphi 0, %s57
      %s61 = sphi 0, %s60
      %s77 = sphi 0, %s61
      %s81 = sphi 0, %s81
      %s83 = sphi 0, %s81
      %s84 = sphi 0, %s83
      %s98 = sphi 0, %s84
      %s102 = sphi 0, %s102
      %s104 = sphi 0, %s102
      %s105 = sphi 0, %s104
      %s119 = sphi 0, %s105
      %s123 = sphi 0, %s123
      %s125 = sphi 0, %s123
      %s126 = sphi 0, %s125
      %s140 = sphi 0, %s126
      %s146 = sphi 0, %s148
      %s149 = sphi 0, %s146
      %s150 = sphi 0, %s149
      %s166 = sphi 0, %s150
    $region4: #{tpu_custom_call.1} parent=1 // loop_header_branch
      %24 = sbr.rel (%p22) target = $region8
    $region5: #{tpu_custom_call.1} parent=1 // loop_body
      %s26 = ssub.s32 %s21, 1
      %s27 = ssub.s32 %s21, 2
      %s28 = sadd.s32 %s21, 1
      %s29 = ssub.s32 %s21, %s28
      %p30 = scmp.eq.s32.totalorder %s29, 0
      %s32 = sadd.s32 %s31, 1
      %s33 = scalar_select %p30, %s31, %s32
      %p36 = pneg %p30
      %p37 = scmp.eq.s32.totalorder %s21, 1
      %p38 = por %p36, %p37
      %p39 = scmp.ne.s32.totalorder %s31, %s34
      %p40 = scmp.eq.s32.totalorder %s21, 0
      %p41 = por %p39, %p40
      %p42 = scmp.ne.s32.totalorder %s31, %s34
      %p43 = scmp.eq.s32.totalorder %s26, 1
      %p44 = por %p42, %p43
      %p45 = scmp.ne.s32.totalorder %s34, %s35
      %p46 = scmp.eq.s32.totalorder %s26, 0
      %p47 = por %p45, %p46
      %p48 = scmp.ne.s32.totalorder %s34, %s35
      %p49 = scmp.eq.s32.totalorder %s27, 1
      %p50 = por %p48, %p49
      %p52 = scmp.ne.s32.totalorder %s35, %s51
      %p53 = scmp.eq.s32.totalorder %s27, 0
      %p54 = por %p52, %p53
      %s55 = ssub.s32 %s21, %s28
      %p56 = scmp.eq.s32.totalorder %s55, 0
      %s58 = sadd.s32 %s57, 1
      %s59 = scalar_select %p56, %s57, %s58
      %p62 = pneg %p56
      %p63 = scmp.eq.s32.totalorder %s21, 1
      %p64 = por %p62, %p63
      %p65 = scmp.ne.s32.totalorder %s57, %s60
      %p66 = scmp.eq.s32.totalorder %s21, 0
      %p67 = por %p65, %p66
      %p68 = scmp.ne.s32.totalorder %s57, %s60
      %p69 = scmp.eq.s32.totalorder %s26, 1
      %p70 = por %p68, %p69
      %p71 = scmp.ne.s32.totalorder %s60, %s61
      %p72 = scmp.eq.s32.totalorder %s26, 0
      %p73 = por %p71, %p72
      %p74 = scmp.ne.s32.totalorder %s60, %s61
      %p75 = scmp.eq.s32.totalorder %s27, 1
      %p76 = por %p74, %p75
      %p78 = scmp.ne.s32.totalorder %s61, %s77
      %p79 = scmp.eq.s32.totalorder %s27, 0
      %p80 = por %p78, %p79
      %s82 = sadd.s32 %s81, 1
      %p85 = scmp.eq.s32.totalorder %s21, 1
      %p86 = scmp.ne.s32.totalorder %s81, %s83
      %p87 = scmp.eq.s32.totalorder %s21, 0
      %p88 = por %p86, %p87
      %p89 = scmp.ne.s32.totalorder %s81, %s83
      %p90 = scmp.eq.s32.totalorder %s26, 1
      %p91 = por %p89, %p90
      %p92 = scmp.ne.s32.totalorder %s83, %s84
      %p93 = scmp.eq.s32.totalorder %s26, 0
      %p94 = por %p92, %p93
      %p95 = scmp.ne.s32.totalorder %s83, %s84
      %p96 = scmp.eq.s32.totalorder %s27, 1
      %p97 = por %p95, %p96
      %p99 = scmp.ne.s32.totalorder %s84, %s98
      %p100 = scmp.eq.s32.totalorder %s27, 0
      %p101 = por %p99, %p100
      %s103 = sadd.s32 %s102, 1
      %p106 = scmp.eq.s32.totalorder %s21, 1
      %p107 = scmp.ne.s32.totalorder %s102, %s104
      %p108 = scmp.eq.s32.totalorder %s21, 0
      %p109 = por %p107, %p108
      %p110 = scmp.ne.s32.totalorder %s102, %s104
      %p111 = scmp.eq.s32.totalorder %s26, 1
      %p112 = por %p110, %p111
      %p113 = scmp.ne.s32.totalorder %s104, %s105
      %p114 = scmp.eq.s32.totalorder %s26, 0
      %p115 = por %p113, %p114
      %p116 = scmp.ne.s32.totalorder %s104, %s105
      %p117 = scmp.eq.s32.totalorder %s27, 1
      %p118 = por %p116, %p117
      %p120 = scmp.ne.s32.totalorder %s105, %s119
      %p121 = scmp.eq.s32.totalorder %s27, 0
      %p122 = por %p120, %p121
      %s124 = sadd.s32 %s123, 1
      %p127 = scmp.eq.s32.totalorder %s21, 1
      %p128 = scmp.ne.s32.totalorder %s123, %s125
      %p129 = scmp.eq.s32.totalorder %s21, 0
      %p130 = por %p128, %p129
      %p131 = scmp.ne.s32.totalorder %s123, %s125
      %p132 = scmp.eq.s32.totalorder %s26, 1
      %p133 = por %p131, %p132
      %p134 = scmp.ne.s32.totalorder %s125, %s126
      %p135 = scmp.eq.s32.totalorder %s26, 0
      %p136 = por %p134, %p135
      %p137 = scmp.ne.s32.totalorder %s125, %s126
      %p138 = scmp.eq.s32.totalorder %s27, 1
      %p139 = por %p137, %p138
      %p141 = scmp.ne.s32.totalorder %s126, %s140
      %p142 = scmp.eq.s32.totalorder %s27, 0
      %p143 = por %p141, %p142
      %s144 = ssub.s32 %s21, %s28
      %p145 = scmp.eq.s32.totalorder %s144, 0
      %s147 = sadd.s32 %s146, 1
      %s148 = scalar_select %p145, %s146, %s147
      %p151 = pneg %p145
      %p152 = scmp.eq.s32.totalorder %s21, 1
      %p153 = por %p151, %p152
      %p154 = scmp.ne.s32.totalorder %s146, %s149
      %p155 = scmp.eq.s32.totalorder %s21, 0
      %p156 = por %p154, %p155
      %p157 = scmp.ne.s32.totalorder %s146, %s149
      %p158 = scmp.eq.s32.totalorder %s26, 1
      %p159 = por %p157, %p158
      %p160 = scmp.ne.s32.totalorder %s149, %s150
      %p161 = scmp.eq.s32.totalorder %s26, 0
      %p162 = por %p160, %p161
      %p163 = scmp.ne.s32.totalorder %s149, %s150
      %p164 = scmp.eq.s32.totalorder %s27, 1
      %p165 = por %p163, %p164
      %p167 = scmp.ne.s32.totalorder %s150, %s166
      %p168 = scmp.eq.s32.totalorder %s27, 0
      %p169 = por %p167, %p168
      %p170 = scmp.le.s32.totalorder 1, %s21
      %p171 = scmp.lt.s32.totalorder %s21, 3
      %p172 = pnand %p170, %p171
      %p173 = pneg %p172
      // Predicated region
      $region9: #{tpu_custom_call.1} parent=5 // pred_check
        _
      $region10: #{tpu_custom_call.1} parent=5 // pred_check_branch
        %175 = sbr.rel (%p172) target = $region12
      $region11: #{tpu_custom_call.1} parent=5 // pred_region
        %s176 = ssub.s32 %s21, 1
        // Predicated region
        $region13: #{tpu_custom_call.1} parent=11 // pred_check
          %p177 = pneg %p94
        $region14: #{tpu_custom_call.1} parent=11 // pred_check_branch
          %179 = sbr.rel (%p177) target = $region16
        $region15: #{tpu_custom_call.1} parent=11 // pred_region
          %s181 = ssub.s32 128, 128
          %182 = vsyncadd [#allocation6], %s181
          %s184 = sshll.u32 [#allocation7], 4
          %s185 = int_to_ptr.vmem [resolvable:$true] %s184
          %187 = dma.hbm_to_vmem [thread:$0]  %s2, 128, %s185, [#allocation6]
        $region16: #{tpu_custom_call.1} parent=11 // pred_fallthru
          _
        // Predicated region
        $region17: #{tpu_custom_call.1} parent=11 // pred_check
          %p188 = pneg %p115
        $region18: #{tpu_custom_call.1} parent=11 // pred_check_branch
          %190 = sbr.rel (%p188) target = $region20
        $region19: #{tpu_custom_call.1} parent=11 // pred_region
          _
        $region20: #{tpu_custom_call.1} parent=11 // pred_fallthru
          _
        // Predicated region
        $region21: #{tpu_custom_call.1} parent=11 // pred_check
          %p191 = pneg %p136
        $region22: #{tpu_custom_call.1} parent=11 // pred_check_branch
          %193 = sbr.rel (%p191) target = $region24
        $region23: #{tpu_custom_call.1} parent=11 // pred_region
          %s195 = ssub.s32 512, 512
          %196 = vsyncadd [#allocation9], %s195
          %s197 = sshll.u32 [#allocation8], 4
          %s198 = int_to_ptr.vmem [resolvable:$true] %s197
          %203 = dma.hbm_to_vmem [thread:$0]  %s4, 512, %s198, [#allocation9], 256, 256, 16
        $region24: #{tpu_custom_call.1} parent=11 // pred_fallthru
          _
      $region12: #{tpu_custom_call.1} parent=5 // pred_fallthru
        _
      %p204 = scmp.lt.s32.totalorder %s21, 2
      // Predicated region
      $region25: #{tpu_custom_call.1} parent=5 // pred_check
        %p205 = pneg %p204
      $region26: #{tpu_custom_call.1} parent=5 // pred_check_branch
        %207 = sbr.rel (%p205) target = $region28
      $region27: #{tpu_custom_call.1} parent=5 // pred_region
        // Predicated region
        $region29: #{tpu_custom_call.1} parent=27 // pred_check
          %p208 = pneg %p41
        $region30: #{tpu_custom_call.1} parent=27 // pred_check_branch
          %210 = sbr.rel (%p208) target = $region32
        $region31: #{tpu_custom_call.1} parent=27 // pred_region
          %s211 = sand.u32 %s31, 1
          %s212 = scalar_lea.sflag [#allocation3], %s211
          %s213 = sand.u32 %s31, 1
          %s214 = smul.addr %s213, 32
          %s215 = scalar_lea.vmem [#allocation2], %s214
          %s216 = smul.u32 2, %s21
          %s218 = ssub.s32 512, 512
          %219 = vsyncadd %s212, %s218
          %s220 = smul.addr %s216, 2
          %s221 = smul.addr %s220, 128
          %s222 = scalar_lea.hbm %s0, %s221
          %s223 = sshll.u32 %s215, 4
          %s224 = int_to_ptr.vmem [resolvable:$true] %s223
          %229 = dma.hbm_to_vmem [thread:$0]  %s222, 512, %s224, %s212, 256, 256, 16
        $region32: #{tpu_custom_call.1} parent=27 // pred_fallthru
          _
        // Predicated region
        $region33: #{tpu_custom_call.1} parent=27 // pred_check
          %p230 = pneg %p67
        $region34: #{tpu_custom_call.1} parent=27 // pred_check_branch
          %232 = sbr.rel (%p230) target = $region36
        $region35: #{tpu_custom_call.1} parent=27 // pred_region
          %s233 = sand.u32 %s21, 1
          %s234 = scalar_lea.sflag [#allocation6], %s233
          %s235 = sand.u32 %s57, 1
          %s236 = smul.addr %s235, 16
          %s237 = scalar_lea.vmem [#allocation5], %s236
          %s238 = smul.u32 2, %s21
          %s240 = ssub.s32 256, 256
          %241 = vsyncadd %s234, %s240
          %s242 = smul.addr %s238, 2
          %s243 = smul.addr %s242, 64
          %s244 = scalar_lea.hbm %s1, %s243
          %s245 = sshll.u32 %s237, 4
          %s246 = int_to_ptr.vmem [resolvable:$true] %s245
          %251 = dma.hbm_to_vmem [thread:$0]  %s244, 256, %s246, %s234, 128, 128, 8
        $region36: #{tpu_custom_call.1} parent=27 // pred_fallthru
          _
      $region28: #{tpu_custom_call.1} parent=5 // pred_fallthru
        _
      %p252 = scmp.le.s32.totalorder 1, %s21
      %p253 = scmp.lt.s32.totalorder %s21, 3
      %p254 = pnand %p252, %p253
      %p255 = pneg %p254
      // Predicated region
      $region37: #{tpu_custom_call.1} parent=5 // pred_check
        _
      $region38: #{tpu_custom_call.1} parent=5 // pred_check_branch
        %257 = sbr.rel (%p254) target = $region40
      $region39: #{tpu_custom_call.1} parent=5 // pred_region
        %s258 = ssub.s32 %s21, 1
        %s259 = sand.u32 %s34, 1
        %s260 = scalar_lea.sflag [#allocation3], %s259
        %s261 = sand.u32 %s34, 1
        %s262 = smul.addr %s261, 32
        %s263 = scalar_lea.vmem [#allocation2], %s262
        // Predicated region
        $region41: #{tpu_custom_call.1} parent=39 // pred_check
          %p264 = pneg %p47
        $region42: #{tpu_custom_call.1} parent=39 // pred_check_branch
          %266 = sbr.rel (%p264) target = $region44
        $region43: #{tpu_custom_call.1} parent=39 // pred_region
          %267 = dma.done %s260, 512
        $region44: #{tpu_custom_call.1} parent=39 // pred_fallthru
          _
        %s268 = sand.u32 %s26, 1
        %s269 = scalar_lea.sflag [#allocation6], %s268
        %s270 = sand.u32 %s60, 1
        %s271 = smul.addr %s270, 16
        %s272 = scalar_lea.vmem [#allocation5], %s271
        // Predicated region
        $region45: #{tpu_custom_call.1} parent=39 // pred_check
          %p273 = pneg %p73
        $region46: #{tpu_custom_call.1} parent=39 // pred_check_branch
          %275 = sbr.rel (%p273) target = $region48
        $region47: #{tpu_custom_call.1} parent=39 // pred_region
          %276 = dma.done %s269, 256
        $region48: #{tpu_custom_call.1} parent=39 // pred_fallthru
          _
        // Predicated region
        $region49: #{tpu_custom_call.1} parent=39 // pred_check
          %p277 = pneg %p94
        $region50: #{tpu_custom_call.1} parent=39 // pred_check_branch
          %279 = sbr.rel (%p277) target = $region52
        $region51: #{tpu_custom_call.1} parent=39 // pred_region
          %280 = dma.done [#allocation6], 128
        $region52: #{tpu_custom_call.1} parent=39 // pred_fallthru
          _
        // Predicated region
        $region53: #{tpu_custom_call.1} parent=39 // pred_check
          %p281 = pneg %p136
        $region54: #{tpu_custom_call.1} parent=39 // pred_check_branch
          %283 = sbr.rel (%p281) target = $region56
        $region55: #{tpu_custom_call.1} parent=39 // pred_region
          %284 = dma.done [#allocation9], 512
        $region56: #{tpu_custom_call.1} parent=39 // pred_fallthru
          _
        %s285 = sand.u32 %s34, 1
        %s286 = scalar_lea.sflag [#allocation3], %s285
        %s287 = sand.u32 %s34, 1
        %s288 = smul.addr %s287, 32
        %s289 = scalar_lea.vmem [#allocation2], %s288
        %p290 = pneg %p47
        %p291 = pneg %p44
        %s292 = sand.u32 %s26, 1
        %s293 = scalar_lea.sflag [#allocation6], %s292
        %s294 = sand.u32 %s60, 1
        %s295 = smul.addr %s294, 16
        %s296 = scalar_lea.vmem [#allocation5], %s295
        %p297 = pneg %p73
        %p298 = pneg %p70
        %p299 = pneg %p94
        %p300 = pneg %p91
        %p301 = pneg %p115
        %p302 = pneg %p112
        %p303 = pneg %p136
        %p304 = pneg %p133
        %p305 = pneg %p162
        %p306 = pneg %p159
        %s307 = sand.u32 %s149, 1
        %s308 = scalar_lea.sflag [#allocation4], %s307
        %s309 = sand.u32 %s149, 1
        %s310 = smul.addr %s309, 16
        %s311 = scalar_lea.vmem [#allocation10], %s310
        %s312 = smul.u32 2, %s26
        %s313 = smul.u32 2, %s26
        %s314 = smul.u32 2, %s26
        %v315 = vld [vmem:[#allocation7] sm:$0xff]
        %v316 = vld [vmem:[%s3] sm:$0xf]
        %v317 = vld [vmem:[#allocation8] sm:$0xff]
        %v318 = vld [vmem:[#allocation8 + $0x8] sm:$0xff]
        %v319 = vld [vmem:[#allocation8 + $0x10] sm:$0x1]
        %v320 = vld [vmem:[#allocation8 + $0x18] sm:$0x1]
        %v321 = vld [vmem:[%s263] sm:$0xff]
        %v322 = vld [vmem:[%s263 + $0x8] sm:$0xff]
        %v323 = vld [vmem:[%s272] sm:$0xff]
        %v324 = vadd.f32 %v321, %v322
        %325 = vadd.xlane.f32.xlu0 %v324
        %v326 = vpop.xlane.xlu0 %325
        %vm327 = vcmask 64512
        %v329 = vsel %vm327, %v315, 0
        %331 = vmatprep.subr.mxu0 0.0
        %332 = vmatpush1.msra.mxu0 %v326
        %333 = vmatprep.subr.mxu0 0.0
        %334 = vmatpush1.msra.mxu0 0.0
        %335 = vmatprep.subr.mxu0 0.0
        %336 = vmatpush1.msra.mxu0 0.0
        %337 = vmatprep.subr.mxu0 0.0
        %338 = vmatpush1.msra.mxu0 0.0
        %339 = vmatprep.subr.mxu0 0.0
        %340 = vmatpush1.msra.mxu0 0.0
        %341 = vmatprep.subr.mxu0 0.0
        %342 = vmatpush1.msra.mxu0 0.0
        %343 = vmatprep.subr.mxu0 0.0
        %344 = vmatpush1.msra.mxu0 0.0
        %345 = vmatprep.subr.mxu0 0.0
        %346 = vmatpush1.msra.mxu0 0.0
        %347 = vmatprep.subr.mxu0 0.0
        %348 = vmatpush1.msra.mxu0 0.0
        %349 = vmatprep.subr.mxu0 0.0
        %350 = vmatpush1.msra.mxu0 0.0
        %351 = vmatprep.subr.mxu0 0.0
        %352 = vmatpush1.msra.mxu0 0.0
        %353 = vmatprep.subr.mxu0 0.0
        %354 = vmatpush1.msra.mxu0 0.0
        %355 = vmatprep.subr.mxu0 0.0
        %356 = vmatpush1.msra.mxu0 0.0
        %357 = vmatprep.subr.mxu0 0.0
        %358 = vmatpush1.msra.mxu0 0.0
        %359 = vmatprep.subr.mxu0 0.0
        %360 = vmatpush1.msra.mxu0 0.0
        %361 = vmatprep.subr.mxu0 0.0
        %362 = vmatpush1.msra.mxu0 0.0
        %363 = vmatprep.subr.mxu0 0.0
        %364 = vmatpush1.msra.mxu0 0.0
        %365 = vmatprep.subr.mxu0 0.0
        %366 = vmatpush1.msra.mxu0 0.0
        %367 = vmatprep.subr.mxu0 0.0
        %368 = vmatpush1.msra.mxu0 0.0
        %369 = vmatprep.subr.mxu0 0.0
        %370 = vmatpush1.msra.mxu0 0.0
        %371 = vmatprep.subr.mxu0 0.0
        %372 = vmatpush1.msra.mxu0 0.0
        %373 = vmatprep.subr.mxu0 0.0
        %374 = vmatpush1.msra.mxu0 0.0
        %375 = vmatprep.subr.mxu0 0.0
        %376 = vmatpush1.msra.mxu0 0.0
        %377 = vmatprep.subr.mxu0 0.0
        %378 = vmatpush1.msra.mxu0 0.0
        %379 = vmatprep.subr.mxu0 0.0
        %380 = vmatpush1.msra.mxu0 0.0
        %381 = vmatprep.subr.mxu0 0.0
        %382 = vmatpush1.msra.mxu0 0.0
        %383 = vmatprep.subr.mxu0 0.0
        %384 = vmatpush1.msra.mxu0 0.0
        %385 = vmatprep.subr.mxu0 0.0
        %386 = vmatpush1.msra.mxu0 0.0
        %387 = vmatprep.subr.mxu0 0.0
        %388 = vmatpush1.msra.mxu0 0.0
        %389 = vmatprep.subr.mxu0 0.0
        %390 = vmatpush1.msra.mxu0 0.0
        %391 = vmatprep.subr.mxu0 0.0
        %392 = vmatpush1.msra.mxu0 0.0
        %393 = vmatprep.subr.mxu0 0.0
        %394 = vmatpush1.msra.mxu0 0.0
        %395 = vmatprep.mubr.f32.mxu0 0.0
        %396 = vmatmul.mubr.f32.gmra.mrb[0].mxu0 %v329
        %v397 = vpop.f32.mrb[0].mxu0
        %v398 = vadd.f32 0.0, %v397
        %v399 = vpop.f32.mrb[0].mxu0
        %400 = vdwg.mxu0
        %402 = vset.pattern.permute.xlu0 0
        %403 = vperm.xlu0 %402, %v398
        %v404 = vpop.permute.xlu0 %403
        %v406 = vsub.f32 %v321, %v404
        %v407 = vsub.f32 %v322, %v404
        %v408 = vmul.f32 %v406, %v406
        %v409 = vmul.f32 %v407, %v407
        %v410 = vadd.f32 %v408, %v409
        %411 = vadd.xlane.f32.xlu0 %v410
        %v412 = vpop.xlane.xlu0 %411
        %413 = vmatprep.subr.mxu0 0.0
        %414 = vmatpush1.msra.mxu0 %v412
        %415 = vmatprep.subr.mxu0 0.0
        %416 = vmatpush1.msra.mxu0 0.0
        %417 = vmatprep.subr.mxu0 0.0
        %418 = vmatpush1.msra.mxu0 0.0
        %419 = vmatprep.subr.mxu0 0.0
        %420 = vmatpush1.msra.mxu0 0.0
        %421 = vmatprep.subr.mxu0 0.0
        %422 = vmatpush1.msra.mxu0 0.0
        %423 = vmatprep.subr.mxu0 0.0
        %424 = vmatpush1.msra.mxu0 0.0
        %425 = vmatprep.subr.mxu0 0.0
        %426 = vmatpush1.msra.mxu0 0.0
        %427 = vmatprep.subr.mxu0 0.0
        %428 = vmatpush1.msra.mxu0 0.0
        %429 = vmatprep.subr.mxu0 0.0
        %430 = vmatpush1.msra.mxu0 0.0
        %431 = vmatprep.subr.mxu0 0.0
        %432 = vmatpush1.msra.mxu0 0.0
        %433 = vmatprep.subr.mxu0 0.0
        %434 = vmatpush1.msra.mxu0 0.0
        %435 = vmatprep.subr.mxu0 0.0
        %436 = vmatpush1.msra.mxu0 0.0
        %437 = vmatprep.subr.mxu0 0.0
        %438 = vmatpush1.msra.mxu0 0.0
        %439 = vmatprep.subr.mxu0 0.0
        %440 = vmatpush1.msra.mxu0 0.0
        %441 = vmatprep.subr.mxu0 0.0
        %442 = vmatpush1.msra.mxu0 0.0
        %443 = vmatprep.subr.mxu0 0.0
        %444 = vmatpush1.msra.mxu0 0.0
        %445 = vmatprep.subr.mxu0 0.0
        %446 = vmatpush1.msra.mxu0 0.0
        %447 = vmatprep.subr.mxu0 0.0
        %448 = vmatpush1.msra.mxu0 0.0
        %449 = vmatprep.subr.mxu0 0.0
        %450 = vmatpush1.msra.mxu0 0.0
        %451 = vmatprep.subr.mxu0 0.0
        %452 = vmatpush1.msra.mxu0 0.0
        %453 = vmatprep.subr.mxu0 0.0
        %454 = vmatpush1.msra.mxu0 0.0
        %455 = vmatprep.subr.mxu0 0.0
        %456 = vmatpush1.msra.mxu0 0.0
        %457 = vmatprep.subr.mxu0 0.0
        %458 = vmatpush1.msra.mxu0 0.0
        %459 = vmatprep.subr.mxu0 0.0
        %460 = vmatpush1.msra.mxu0 0.0
        %461 = vmatprep.subr.mxu0 0.0
        %462 = vmatpush1.msra.mxu0 0.0
        %463 = vmatprep.subr.mxu0 0.0
        %464 = vmatpush1.msra.mxu0 0.0
        %465 = vmatprep.subr.mxu0 0.0
        %466 = vmatpush1.msra.mxu0 0.0
        %467 = vmatprep.subr.mxu0 0.0
        %468 = vmatpush1.msra.mxu0 0.0
        %469 = vmatprep.subr.mxu0 0.0
        %470 = vmatpush1.msra.mxu0 0.0
        %471 = vmatprep.subr.mxu0 0.0
        %472 = vmatpush1.msra.mxu0 0.0
        %473 = vmatprep.subr.mxu0 0.0
        %474 = vmatpush1.msra.mxu0 0.0
        %475 = vmatprep.subr.mxu0 0.0
        %476 = vmatpush1.msra.mxu0 0.0
        %477 = vmatprep.mubr.f32.mxu0 0.0
        %478 = vmatmul.mubr.f32.gmra.mrb[0].mxu0 %v329
        %v479 = vpop.f32.mrb[0].mxu0
        %v480 = vadd.f32 1e-06, %v479
        %v481 = vpop.f32.mrb[0].mxu0
        %482 = vdwg.mxu0
        %v483 = vrsqrt.pop %v480
        %485 = vset.pattern.permute.xlu0 0
        %486 = vperm.xlu0 %485, %v483
        %v487 = vpop.permute.xlu0 %486
        %v489 = vmul.f32 %v406, %v487
        %v490 = vmul.f32 %v407, %v487
        %491 = vset.pattern.permute.xlu0 8
        %492 = vperm.xlu0 %491, %v315
        %v493 = vpop.permute.xlu0 %492
        %v495 = vmul.f32 %v489, %v493
        %v496 = vmul.f32 %v490, %v493
        %497 = vset.pattern.permute.xlu0 9
        %498 = vperm.xlu0 %497, %v315
        %v499 = vpop.permute.xlu0 %498
        %v501 = vadd.f32 %v495, %v499
        %v502 = vadd.f32 %v496, %v499
        %v503 = vxor.u32 %v501, 2147483648
        %v504 = vxor.u32 %v502, 2147483648
        %v505 = vmul.f32 %v503, 1.442695
        %v506 = vpow.pop %v505
        %v507 = vmul.f32 %v504, 1.442695
        %v508 = vpow.pop %v507
        %v509 = vadd.f32 %v506, 1.0
        %v510 = vadd.f32 %v508, 1.0
        %v511 = vrcp.pop %v509
        %v512 = vmul.f32 1.0, %v511
        %v513 = vrcp.pop %v510
        %v514 = vmul.f32 1.0, %v513
        %v515 = vmul.f32 %v501, %v512
        %v516 = vmul.f32 %v502, %v514
        %517 = vrot.lane.b32.xlu0 %v515, 17
        %v518 = vpop.permute.xlu0 %517
        %519 = vrot.lane.b32.xlu0 %v516, 17
        %v520 = vpop.permute.xlu0 %519
        %v521 = vlaneseq
        %v522 = vand.u32 %v521, 127
        %vm523 = vcmp.lt.s32.totalorder %v522, 17
        %v524 = vsel %vm523, %v518, %v520
        %v525 = vsel %vm523, %v520, %v518
        %v526 = vlaneseq
        %v527 = vshrl.u32 %v526, 7
        %v528 = vsub.s32 0, %v527
        %v529 = vrot.slane %v317, %v528
        %v530 = vlaneseq
        %v531 = vshrl.u32 %v530, 7
        %v532 = vsub.s32 0, %v531
        %v533 = vrot.slane %v318, %v532
        %v534 = vmul.f32 %v525, %v529
        %v535 = vmul.f32 %v524, %v533
        %536 = vrot.lane.b32.xlu0 %v515, 16
        %v537 = vpop.permute.xlu0 %536
        %538 = vrot.lane.b32.xlu0 %v516, 16
        %v539 = vpop.permute.xlu0 %538
        %vm540 = vcmp.lt.s32.totalorder %v522, 16
        %v541 = vsel %vm540, %v537, %v539
        %v542 = vsel %vm540, %v539, %v537
        %v543 = vlaneseq
        %v544 = vshrl.u32 %v543, 7
        %v545 = vsub.s32 1, %v544
        %v546 = vrot.slane %v317, %v545
        %v547 = vlaneseq
        %v548 = vshrl.u32 %v547, 7
        %v549 = vsub.s32 1, %v548
        %v550 = vrot.slane %v318, %v549
        %v551 = vmul.f32 %v542, %v546
        %v552 = vmul.f32 %v541, %v550
        %553 = vrot.lane.b32.xlu0 %v515, 15
        %v554 = vpop.permute.xlu0 %553
        %555 = vrot.lane.b32.xlu0 %v516, 15
        %v556 = vpop.permute.xlu0 %555
        %vm557 = vcmp.lt.s32.totalorder %v522, 15
        %v558 = vsel %vm557, %v554, %v556
        %v559 = vsel %vm557, %v556, %v554
        %v560 = vlaneseq
        %v561 = vshrl.u32 %v560, 7
        %v562 = vsub.s32 2, %v561
        %v563 = vrot.slane %v317, %v562
        %v564 = vlaneseq
        %v565 = vshrl.u32 %v564, 7
        %v566 = vsub.s32 2, %v565
        %v567 = vrot.slane %v318, %v566
        %v568 = vmul.f32 %v559, %v563
        %v569 = vmul.f32 %v558, %v567
        %570 = vrot.lane.b32.xlu0 %v515, 1
        %v571 = vpop.permute.xlu0 %570
        %572 = vrot.lane.b32.xlu0 %v516, 1
        %v573 = vpop.permute.xlu0 %572
        %vm574 = vcmp.lt.s32.totalorder %v522, 1
        %v575 = vsel %vm574, %v571, %v573
        %v576 = vsel %vm574, %v573, %v571
        %v577 = vlaneseq
        %v578 = vshrl.u32 %v577, 7
        %v579 = vsub.s32 3, %v578
        %v580 = vrot.slane %v317, %v579
        %v581 = vlaneseq
        %v582 = vshrl.u32 %v581, 7
        %v583 = vsub.s32 3, %v582
        %v584 = vrot.slane %v318, %v583
        %v585 = vmul.f32 %v576, %v580
        %v586 = vmul.f32 %v575, %v584
        %587 = vrot.lane.b32.xlu0 %v515, 127
        %v588 = vpop.permute.xlu0 %587
        %589 = vrot.lane.b32.xlu0 %v516, 127
        %v590 = vpop.permute.xlu0 %589
        %vm591 = vcmp.lt.s32.totalorder %v522, 127
        %v592 = vsel %vm591, %v588, %v590
        %v593 = vsel %vm591, %v590, %v588
        %v594 = vlaneseq
        %v595 = vshrl.u32 %v594, 7
        %v596 = vsub.s32 5, %v595
        %v597 = vrot.slane %v317, %v596
        %v598 = vlaneseq
        %v599 = vshrl.u32 %v598, 7
        %v600 = vsub.s32 5, %v599
        %v601 = vrot.slane %v318, %v600
        %v602 = vmul.f32 %v592, %v597
        %v603 = vmul.f32 %v593, %v601
        %604 = vrot.lane.b32.xlu0 %v515, 113
        %v605 = vpop.permute.xlu0 %604
        %606 = vrot.lane.b32.xlu0 %v516, 113
        %v607 = vpop.permute.xlu0 %606
        %vm608 = vcmp.lt.s32.totalorder %v522, 113
        %v609 = vsel %vm608, %v605, %v607
        %v610 = vsel %vm608, %v607, %v605
        %v611 = vlaneseq
        %v612 = vshrl.u32 %v611, 7
        %v613 = vsub.s32 6, %v612
        %v614 = vrot.slane %v317, %v613
        %v615 = vlaneseq
        %v616 = vshrl.u32 %v615, 7
        %v617 = vsub.s32 6, %v616
        %v618 = vrot.slane %v318, %v617
        %v619 = vmul.f32 %v609, %v614
        %v620 = vmul.f32 %v610, %v618
        %621 = vrot.lane.b32.xlu0 %v515, 112
        %v622 = vpop.permute.xlu0 %621
        %623 = vrot.lane.b32.xlu0 %v516, 112
        %v624 = vpop.permute.xlu0 %623
        %vm625 = vcmp.lt.s32.totalorder %v522, 112
        %v626 = vsel %vm625, %v622, %v624
        %v627 = vsel %vm625, %v624, %v622
        %v628 = vlaneseq
        %v629 = vshrl.u32 %v628, 7
        %v630 = vsub.s32 7, %v629
        %v631 = vrot.slane %v317, %v630
        %v632 = vlaneseq
        %v633 = vshrl.u32 %v632, 7
        %v634 = vsub.s32 7, %v633
        %v635 = vrot.slane %v318, %v634
        %v636 = vmul.f32 %v626, %v631
        %v637 = vmul.f32 %v627, %v635
        %638 = vrot.lane.b32.xlu0 %v515, 111
        %v639 = vpop.permute.xlu0 %638
        %640 = vrot.lane.b32.xlu0 %v516, 111
        %v641 = vpop.permute.xlu0 %640
        %vm642 = vcmp.lt.s32.totalorder %v522, 111
        %v643 = vsel %vm642, %v639, %v641
        %v644 = vsel %vm642, %v641, %v639
        %v645 = vlaneseq
        %v646 = vshrl.u32 %v645, 7
        %v647 = vsub.s32 0, %v646
        %v648 = vrot.slane %v319, %v647
        %v649 = vlaneseq
        %v650 = vshrl.u32 %v649, 7
        %v651 = vsub.s32 0, %v650
        %v652 = vrot.slane %v320, %v651
        %v653 = vmul.f32 %v643, %v648
        %v654 = vmul.f32 %v644, %v652
        %656 = vset.pattern.permute.xlu0 72
        %657 = vperm.xlu0 %656, %v316
        %v658 = vpop.permute.xlu0 %657
        %vm660 = vcmask 588800
        %v661 = vsel %vm660, %v316, 0
        %663 = vmatprep.subr.mxu0 %v535
        %664 = vmatpush1.msra.mxu0 %v534
        %665 = vmatprep.subr.mxu0 %v552
        %666 = vmatpush1.msra.mxu0 %v551
        %667 = vmatprep.subr.mxu0 %v569
        %668 = vmatpush1.msra.mxu0 %v568
        %669 = vmatprep.subr.mxu0 %v586
        %670 = vmatpush1.msra.mxu0 %v585
        %671 = vmatprep.subr.mxu0 %v516
        %672 = vmatpush1.msra.mxu0 %v515
        %673 = vmatprep.subr.mxu0 %v603
        %674 = vmatpush1.msra.mxu0 %v602
        %675 = vmatprep.subr.mxu0 %v620
        %676 = vmatpush1.msra.mxu0 %v619
        %677 = vmatprep.subr.mxu0 %v637
        %678 = vmatpush1.msra.mxu0 %v636
        %679 = vmatprep.subr.mxu0 %v654
        %680 = vmatpush1.msra.mxu0 %v653
        %681 = vmatprep.subr.mxu0 0.0
        %682 = vmatpush1.msra.mxu0 0.0
        %683 = vmatprep.subr.mxu0 0.0
        %684 = vmatpush1.msra.mxu0 0.0
        %685 = vmatprep.subr.mxu0 0.0
        %686 = vmatpush1.msra.mxu0 0.0
        %687 = vmatprep.subr.mxu0 0.0
        %688 = vmatpush1.msra.mxu0 0.0
        %689 = vmatprep.subr.mxu0 0.0
        %690 = vmatpush1.msra.mxu0 0.0
        %691 = vmatprep.subr.mxu0 0.0
        %692 = vmatpush1.msra.mxu0 0.0
        %693 = vmatprep.subr.mxu0 0.0
        %694 = vmatpush1.msra.mxu0 0.0
        %695 = vmatprep.subr.mxu0 0.0
        %696 = vmatpush1.msra.mxu0 0.0
        %697 = vmatprep.subr.mxu0 0.0
        %698 = vmatpush1.msra.mxu0 0.0
        %699 = vmatprep.subr.mxu0 0.0
        %700 = vmatpush1.msra.mxu0 0.0
        %701 = vmatprep.subr.mxu0 0.0
        %702 = vmatpush1.msra.mxu0 0.0
        %703 = vmatprep.subr.mxu0 0.0
        %704 = vmatpush1.msra.mxu0 0.0
        %705 = vmatprep.subr.mxu0 0.0
        %706 = vmatpush1.msra.mxu0 0.0
        %707 = vmatprep.subr.mxu0 0.0
        %708 = vmatpush1.msra.mxu0 0.0
        %709 = vmatprep.subr.mxu0 0.0
        %710 = vmatpush1.msra.mxu0 0.0
        %711 = vmatprep.subr.mxu0 0.0
        %712 = vmatpush1.msra.mxu0 0.0
        %713 = vmatprep.subr.mxu0 0.0
        %714 = vmatpush1.msra.mxu0 0.0
        %715 = vmatprep.subr.mxu0 0.0
        %716 = vmatpush1.msra.mxu0 0.0
        %717 = vmatprep.subr.mxu0 0.0
        %718 = vmatpush1.msra.mxu0 0.0
        %719 = vmatprep.subr.mxu0 0.0
        %720 = vmatpush1.msra.mxu0 0.0
        %721 = vmatprep.subr.mxu0 0.0
        %722 = vmatpush1.msra.mxu0 0.0
        %723 = vmatprep.subr.mxu0 0.0
        %724 = vmatpush1.msra.mxu0 0.0
        %725 = vmatprep.subr.mxu0 0.0
        %726 = vmatpush1.msra.mxu0 0.0
        %727 = vmatprep.mubr.f32.mxu0 0.0
        %728 = vmatmul.mubr.f32.gmra.mrb[0].mxu0 %v661
        %v729 = vpop.f32.mrb[0].mxu0
        %v730 = vadd.f32 %v658, %v729
        %v731 = vpop.f32.mrb[0].mxu0
        %v732 = vadd.f32 %v658, %v731
        %733 = vdwg.mxu0
        %v735 = vcombine.high %v323, %v323
        %v737 = vadd.f32 %v730, %v323
        %v738 = vadd.f32 %v732, %v735
        %v741 = vcombine.low %v737, %v738
        %743 = vst [vmem:[%s311] sm:$0xff] %v741
        %s744 = scalar_lea.vmem %s263, 16 [#allocation2]
        %v745 = vld [vmem:[%s744] sm:$0xff]
        %v746 = vld [vmem:[%s744 + $0x8] sm:$0xff]
        %s747 = scalar_lea.vmem %s272, 8 [#allocation5]
        %v748 = vld [vmem:[%s747] sm:$0xff]
        %v749 = vadd.f32 %v745, %v746
        %750 = vadd.xlane.f32.xlu0 %v749
        %v751 = vpop.xlane.xlu0 %750
        %752 = vmatprep.subr.mxu0 0.0
        %753 = vmatpush1.msra.mxu0 %v751
        %754 = vmatprep.subr.mxu0 0.0
        %755 = vmatpush1.msra.mxu0 0.0
        %756 = vmatprep.subr.mxu0 0.0
        %757 = vmatpush1.msra.mxu0 0.0
        %758 = vmatprep.subr.mxu0 0.0
        %759 = vmatpush1.msra.mxu0 0.0
        %760 = vmatprep.subr.mxu0 0.0
        %761 = vmatpush1.msra.mxu0 0.0
        %762 = vmatprep.subr.mxu0 0.0
        %763 = vmatpush1.msra.mxu0 0.0
        %764 = vmatprep.subr.mxu0 0.0
        %765 = vmatpush1.msra.mxu0 0.0
        %766 = vmatprep.subr.mxu0 0.0
        %767 = vmatpush1.msra.mxu0 0.0
        %768 = vmatprep.subr.mxu0 0.0
        %769 = vmatpush1.msra.mxu0 0.0
        %770 = vmatprep.subr.mxu0 0.0
        %771 = vmatpush1.msra.mxu0 0.0
        %772 = vmatprep.subr.mxu0 0.0
        %773 = vmatpush1.msra.mxu0 0.0
        %774 = vmatprep.subr.mxu0 0.0
        %775 = vmatpush1.msra.mxu0 0.0
        %776 = vmatprep.subr.mxu0 0.0
        %777 = vmatpush1.msra.mxu0 0.0
        %778 = vmatprep.subr.mxu0 0.0
        %779 = vmatpush1.msra.mxu0 0.0
        %780 = vmatprep.subr.mxu0 0.0
        %781 = vmatpush1.msra.mxu0 0.0
        %782 = vmatprep.subr.mxu0 0.0
        %783 = vmatpush1.msra.mxu0 0.0
        %784 = vmatprep.subr.mxu0 0.0
        %785 = vmatpush1.msra.mxu0 0.0
        %786 = vmatprep.subr.mxu0 0.0
        %787 = vmatpush1.msra.mxu0 0.0
        %788 = vmatprep.subr.mxu0 0.0
        %789 = vmatpush1.msra.mxu0 0.0
        %790 = vmatprep.subr.mxu0 0.0
        %791 = vmatpush1.msra.mxu0 0.0
        %792 = vmatprep.subr.mxu0 0.0
        %793 = vmatpush1.msra.mxu0 0.0
        %794 = vmatprep.subr.mxu0 0.0
        %795 = vmatpush1.msra.mxu0 0.0
        %796 = vmatprep.subr.mxu0 0.0
        %797 = vmatpush1.msra.mxu0 0.0
        %798 = vmatprep.subr.mxu0 0.0
        %799 = vmatpush1.msra.mxu0 0.0
        %800 = vmatprep.subr.mxu0 0.0
        %801 = vmatpush1.msra.mxu0 0.0
        %802 = vmatprep.subr.mxu0 0.0
        %803 = vmatpush1.msra.mxu0 0.0
        %804 = vmatprep.subr.mxu0 0.0
        %805 = vmatpush1.msra.mxu0 0.0
        %806 = vmatprep.subr.mxu0 0.0
        %807 = vmatpush1.msra.mxu0 0.0
        %808 = vmatprep.subr.mxu0 0.0
        %809 = vmatpush1.msra.mxu0 0.0
        %810 = vmatprep.subr.mxu0 0.0
        %811 = vmatpush1.msra.mxu0 0.0
        %812 = vmatprep.subr.mxu0 0.0
        %813 = vmatpush1.msra.mxu0 0.0
        %814 = vmatprep.subr.mxu0 0.0
        %815 = vmatpush1.msra.mxu0 0.0
        %816 = vmatprep.mubr.f32.mxu0 0.0
        %817 = vmatmul.mubr.f32.gmra.mrb[0].mxu0 %v329
        %v818 = vpop.f32.mrb[0].mxu0
        %v819 = vadd.f32 0.0, %v818
        %v820 = vpop.f32.mrb[0].mxu0
        %821 = vdwg.mxu0
        %823 = vset.pattern.permute.xlu0 0
        %824 = vperm.xlu0 %823, %v819
        %v825 = vpop.permute.xlu0 %824
        %v827 = vsub.f32 %v745, %v825
        %v828 = vsub.f32 %v746, %v825
        %v829 = vmul.f32 %v827, %v827
        %v830 = vmul.f32 %v828, %v828
        %v831 = vadd.f32 %v829, %v830
        %832 = vadd.xlane.f32.xlu0 %v831
        %v833 = vpop.xlane.xlu0 %832
        %834 = vmatprep.subr.mxu0 0.0
        %835 = vmatpush1.msra.mxu0 %v833
        %836 = vmatprep.subr.mxu0 0.0
        %837 = vmatpush1.msra.mxu0 0.0
        %838 = vmatprep.subr.mxu0 0.0
        %839 = vmatpush1.msra.mxu0 0.0
        %840 = vmatprep.subr.mxu0 0.0
        %841 = vmatpush1.msra.mxu0 0.0
        %842 = vmatprep.subr.mxu0 0.0
        %843 = vmatpush1.msra.mxu0 0.0
        %844 = vmatprep.subr.mxu0 0.0
        %845 = vmatpush1.msra.mxu0 0.0
        %846 = vmatprep.subr.mxu0 0.0
        %847 = vmatpush1.msra.mxu0 0.0
        %848 = vmatprep.subr.mxu0 0.0
        %849 = vmatpush1.msra.mxu0 0.0
        %850 = vmatprep.subr.mxu0 0.0
        %851 = vmatpush1.msra.mxu0 0.0
        %852 = vmatprep.subr.mxu0 0.0
        %853 = vmatpush1.msra.mxu0 0.0
        %854 = vmatprep.subr.mxu0 0.0
        %855 = vmatpush1.msra.mxu0 0.0
        %856 = vmatprep.subr.mxu0 0.0
        %857 = vmatpush1.msra.mxu0 0.0
        %858 = vmatprep.subr.mxu0 0.0
        %859 = vmatpush1.msra.mxu0 0.0
        %860 = vmatprep.subr.mxu0 0.0
        %861 = vmatpush1.msra.mxu0 0.0
        %862 = vmatprep.subr.mxu0 0.0
        %863 = vmatpush1.msra.mxu0 0.0
        %864 = vmatprep.subr.mxu0 0.0
        %865 = vmatpush1.msra.mxu0 0.0
        %866 = vmatprep.subr.mxu0 0.0
        %867 = vmatpush1.msra.mxu0 0.0
        %868 = vmatprep.subr.mxu0 0.0
        %869 = vmatpush1.msra.mxu0 0.0
        %870 = vmatprep.subr.mxu0 0.0
        %871 = vmatpush1.msra.mxu0 0.0
        %872 = vmatprep.subr.mxu0 0.0
        %873 = vmatpush1.msra.mxu0 0.0
        %874 = vmatprep.subr.mxu0 0.0
        %875 = vmatpush1.msra.mxu0 0.0
        %876 = vmatprep.subr.mxu0 0.0
        %877 = vmatpush1.msra.mxu0 0.0
        %878 = vmatprep.subr.mxu0 0.0
        %879 = vmatpush1.msra.mxu0 0.0
        %880 = vmatprep.subr.mxu0 0.0
        %881 = vmatpush1.msra.mxu0 0.0
        %882 = vmatprep.subr.mxu0 0.0
        %883 = vmatpush1.msra.mxu0 0.0
        %884 = vmatprep.subr.mxu0 0.0
        %885 = vmatpush1.msra.mxu0 0.0
        %886 = vmatprep.subr.mxu0 0.0
        %887 = vmatpush1.msra.mxu0 0.0
        %888 = vmatprep.subr.mxu0 0.0
        %889 = vmatpush1.msra.mxu0 0.0
        %890 = vmatprep.subr.mxu0 0.0
        %891 = vmatpush1.msra.mxu0 0.0
        %892 = vmatprep.subr.mxu0 0.0
        %893 = vmatpush1.msra.mxu0 0.0
        %894 = vmatprep.subr.mxu0 0.0
        %895 = vmatpush1.msra.mxu0 0.0
        %896 = vmatprep.subr.mxu0 0.0
        %897 = vmatpush1.msra.mxu0 0.0
        %898 = vmatprep.mubr.f32.mxu0 0.0
        %899 = vmatmul.mubr.f32.gmra.mrb[0].mxu0 %v329
        %v900 = vpop.f32.mrb[0].mxu0
        %v901 = vadd.f32 1e-06, %v900
        %v902 = vpop.f32.mrb[0].mxu0
        %903 = vdwg.mxu0
        %v904 = vrsqrt.pop %v901
        %906 = vset.pattern.permute.xlu0 0
        %907 = vperm.xlu0 %906, %v904
        %v908 = vpop.permute.xlu0 %907
        %v910 = vmul.f32 %v827, %v908
        %v911 = vmul.f32 %v828, %v908
        %v912 = vmul.f32 %v910, %v493
        %v913 = vmul.f32 %v911, %v493
        %v914 = vadd.f32 %v912, %v499
        %v915 = vadd.f32 %v913, %v499
        %v916 = vxor.u32 %v914, 2147483648
        %v917 = vxor.u32 %v915, 2147483648
        %v918 = vmul.f32 %v916, 1.442695
        %v919 = vpow.pop %v918
        %v920 = vmul.f32 %v917, 1.442695
        %v921 = vpow.pop %v920
        %v922 = vadd.f32 %v919, 1.0
        %v923 = vadd.f32 %v921, 1.0
        %v924 = vrcp.pop %v922
        %v925 = vmul.f32 1.0, %v924
        %v926 = vrcp.pop %v923
        %v927 = vmul.f32 1.0, %v926
        %v928 = vmul.f32 %v914, %v925
        %v929 = vmul.f32 %v915, %v927
        %930 = vrot.lane.b32.xlu0 %v928, 17
        %v931 = vpop.permute.xlu0 %930
        %932 = vrot.lane.b32.xlu0 %v929, 17
        %v933 = vpop.permute.xlu0 %932
        %v934 = vsel %vm523, %v931, %v933
        %v935 = vsel %vm523, %v933, %v931
        %v936 = vmul.f32 %v935, %v529
        %v937 = vmul.f32 %v934, %v533
        %938 = vrot.lane.b32.xlu0 %v928, 16
        %v939 = vpop.permute.xlu0 %938
        %940 = vrot.lane.b32.xlu0 %v929, 16
        %v941 = vpop.permute.xlu0 %940
        %v942 = vsel %vm540, %v939, %v941
        %v943 = vsel %vm540, %v941, %v939
        %v944 = vmul.f32 %v943, %v546
        %v945 = vmul.f32 %v942, %v550
        %946 = vrot.lane.b32.xlu0 %v928, 15
        %v947 = vpop.permute.xlu0 %946
        %948 = vrot.lane.b32.xlu0 %v929, 15
        %v949 = vpop.permute.xlu0 %948
        %v950 = vsel %vm557, %v947, %v949
        %v951 = vsel %vm557, %v949, %v947
        %v952 = vmul.f32 %v951, %v563
        %v953 = vmul.f32 %v950, %v567
        %954 = vrot.lane.b32.xlu0 %v928, 1
        %v955 = vpop.permute.xlu0 %954
        %956 = vrot.lane.b32.xlu0 %v929, 1
        %v957 = vpop.permute.xlu0 %956
        %v958 = vsel %vm574, %v955, %v957
        %v959 = vsel %vm574, %v957, %v955
        %v960 = vmul.f32 %v959, %v580
        %v961 = vmul.f32 %v958, %v584
        %962 = vrot.lane.b32.xlu0 %v928, 127
        %v963 = vpop.permute.xlu0 %962
        %964 = vrot.lane.b32.xlu0 %v929, 127
        %v965 = vpop.permute.xlu0 %964
        %v966 = vsel %vm591, %v963, %v965
        %v967 = vsel %vm591, %v965, %v963
        %v968 = vmul.f32 %v966, %v597
        %v969 = vmul.f32 %v967, %v601
        %970 = vrot.lane.b32.xlu0 %v928, 113
        %v971 = vpop.permute.xlu0 %970
        %972 = vrot.lane.b32.xlu0 %v929, 113
        %v973 = vpop.permute.xlu0 %972
        %v974 = vsel %vm608, %v971, %v973
        %v975 = vsel %vm608, %v973, %v971
        %v976 = vmul.f32 %v974, %v614
        %v977 = vmul.f32 %v975, %v618
        %978 = vrot.lane.b32.xlu0 %v928, 112
        %v979 = vpop.permute.xlu0 %978
        %980 = vrot.lane.b32.xlu0 %v929, 112
        %v981 = vpop.permute.xlu0 %980
        %v982 = vsel %vm625, %v979, %v981
        %v983 = vsel %vm625, %v981, %v979
        %v984 = vmul.f32 %v982, %v631
        %v985 = vmul.f32 %v983, %v635
        %986 = vrot.lane.b32.xlu0 %v928, 111
        %v987 = vpop.permute.xlu0 %986
        %988 = vrot.lane.b32.xlu0 %v929, 111
        %v989 = vpop.permute.xlu0 %988
        %v990 = vsel %vm642, %v987, %v989
        %v991 = vsel %vm642, %v989, %v987
        %v992 = vmul.f32 %v990, %v648
        %v993 = vmul.f32 %v991, %v652
        %994 = vmatprep.subr.mxu0 %v937
        %995 = vmatpush1.msra.mxu0 %v936
        %996 = vmatprep.subr.mxu0 %v945
        %997 = vmatpush1.msra.mxu0 %v944
        %998 = vmatprep.subr.mxu0 %v953
        %999 = vmatpush1.msra.mxu0 %v952
        %1000 = vmatprep.subr.mxu0 %v961
        %1001 = vmatpush1.msra.mxu0 %v960
        %1002 = vmatprep.subr.mxu0 %v929
        %1003 = vmatpush1.msra.mxu0 %v928
        %1004 = vmatprep.subr.mxu0 %v969
        %1005 = vmatpush1.msra.mxu0 %v968
        %1006 = vmatprep.subr.mxu0 %v977
        %1007 = vmatpush1.msra.mxu0 %v976
        %1008 = vmatprep.subr.mxu0 %v985
        %1009 = vmatpush1.msra.mxu0 %v984
        %1010 = vmatprep.subr.mxu0 %v993
        %1011 = vmatpush1.msra.mxu0 %v992
        %1012 = vmatprep.subr.mxu0 0.0
        %1013 = vmatpush1.msra.mxu0 0.0
        %1014 = vmatprep.subr.mxu0 0.0
        %1015 = vmatpush1.msra.mxu0 0.0
        %1016 = vmatprep.subr.mxu0 0.0
        %1017 = vmatpush1.msra.mxu0 0.0
        %1018 = vmatprep.subr.mxu0 0.0
        %1019 = vmatpush1.msra.mxu0 0.0
        %1020 = vmatprep.subr.mxu0 0.0
        %1021 = vmatpush1.msra.mxu0 0.0
        %1022 = vmatprep.subr.mxu0 0.0
        %1023 = vmatpush1.msra.mxu0 0.0
        %1024 = vmatprep.subr.mxu0 0.0
        %1025 = vmatpush1.msra.mxu0 0.0
        %1026 = vmatprep.subr.mxu0 0.0
        %1027 = vmatpush1.msra.mxu0 0.0
        %1028 = vmatprep.subr.mxu0 0.0
        %1029 = vmatpush1.msra.mxu0 0.0
        %1030 = vmatprep.subr.mxu0 0.0
        %1031 = vmatpush1.msra.mxu0 0.0
        %1032 = vmatprep.subr.mxu0 0.0
        %1033 = vmatpush1.msra.mxu0 0.0
        %1034 = vmatprep.subr.mxu0 0.0
        %1035 = vmatpush1.msra.mxu0 0.0
        %1036 = vmatprep.subr.mxu0 0.0
        %1037 = vmatpush1.msra.mxu0 0.0
        %1038 = vmatprep.subr.mxu0 0.0
        %1039 = vmatpush1.msra.mxu0 0.0
        %1040 = vmatprep.subr.mxu0 0.0
        %1041 = vmatpush1.msra.mxu0 0.0
        %1042 = vmatprep.subr.mxu0 0.0
        %1043 = vmatpush1.msra.mxu0 0.0
        %1044 = vmatprep.subr.mxu0 0.0
        %1045 = vmatpush1.msra.mxu0 0.0
        %1046 = vmatprep.subr.mxu0 0.0
        %1047 = vmatpush1.msra.mxu0 0.0
        %1048 = vmatprep.subr.mxu0 0.0
        %1049 = vmatpush1.msra.mxu0 0.0
        %1050 = vmatprep.subr.mxu0 0.0
        %1051 = vmatpush1.msra.mxu0 0.0
        %1052 = vmatprep.subr.mxu0 0.0
        %1053 = vmatpush1.msra.mxu0 0.0
        %1054 = vmatprep.subr.mxu0 0.0
        %1055 = vmatpush1.msra.mxu0 0.0
        %1056 = vmatprep.subr.mxu0 0.0
        %1057 = vmatpush1.msra.mxu0 0.0
        %1058 = vmatprep.mubr.f32.mxu0 0.0
        %1059 = vmatmul.mubr.f32.gmra.mrb[0].mxu0 %v661
        %v1060 = vpop.f32.mrb[0].mxu0
        %v1061 = vadd.f32 %v658, %v1060
        %v1062 = vpop.f32.mrb[0].mxu0
        %v1063 = vadd.f32 %v658, %v1062
        %1064 = vdwg.mxu0
        %v1066 = vcombine.high %v748, %v748
        %v1068 = vadd.f32 %v1061, %v748
        %v1069 = vadd.f32 %v1063, %v1066
        %v1072 = vcombine.low %v1068, %v1069
        %s1074 = scalar_lea.vmem %s311, 8 [#allocation10]
        %1075 = vst [vmem:[%s1074] sm:$0xff] %v1072
        %s1076 = sand.u32 %s149, 1
        %s1077 = scalar_lea.sflag [#allocation4], %s1076
        %s1078 = sand.u32 %s149, 1
        %s1079 = smul.addr %s1078, 16
        %s1080 = scalar_lea.vmem [#allocation10], %s1079
        // Predicated region
        $region57: #{tpu_custom_call.1} parent=39 // pred_check
          %p1081 = pneg %p159
        $region58: #{tpu_custom_call.1} parent=39 // pred_check_branch
          %1083 = sbr.rel (%p1081) target = $region60
        $region59: #{tpu_custom_call.1} parent=39 // pred_region
          %s1084 = smul.u32 2, %s26
          %s1086 = ssub.s32 256, 256
          %1087 = vsyncadd %s1077, %s1086
          %s1088 = smul.addr %s1084, 2
          %s1089 = smul.addr %s1088, 64
          %s1090 = scalar_lea.hbm %s5, %s1089
          %s1091 = sshll.u32 %s1080, 4
          %s1092 = int_to_ptr.vmem [resolvable:$true] %s1091
          %1097 = dma.vmem_to_hbm [thread:$0]  %s1092, 256, %s1090, %s1077, 128, 128, 8
        $region60: #{tpu_custom_call.1} parent=39 // pred_fallthru
          _
      $region40: #{tpu_custom_call.1} parent=5 // pred_fallthru
        _
      %p1098 = scmp.le.s32.totalorder 2, %s21
      // Predicated region
      $region61: #{tpu_custom_call.1} parent=5 // pred_check
        %p1099 = pneg %p1098
      $region62: #{tpu_custom_call.1} parent=5 // pred_check_branch
        %1101 = sbr.rel (%p1099) target = $region64
      $region63: #{tpu_custom_call.1} parent=5 // pred_region
        %s1102 = ssub.s32 %s21, 2
        // Predicated region
        $region65: #{tpu_custom_call.1} parent=63 // pred_check
          %p1103 = pneg %p165
        $region66: #{tpu_custom_call.1} parent=63 // pred_check_branch
          %1105 = sbr.rel (%p1103) target = $region68
        $region67: #{tpu_custom_call.1} parent=63 // pred_region
          %s1106 = sand.u32 %s150, 1
          %s1107 = scalar_lea.sflag [#allocation4], %s1106
          %s1108 = sand.u32 %s150, 1
          %s1109 = smul.addr %s1108, 16
          %s1110 = scalar_lea.vmem [#allocation10], %s1109
          %1111 = dma.done %s1107, 256
        $region68: #{tpu_custom_call.1} parent=63 // pred_fallthru
          _
      $region64: #{tpu_custom_call.1} parent=5 // pred_fallthru
        _
    $region6: #{tpu_custom_call.1} parent=1 // loop_footer
      %s25 = sadd.s32 1, %s21
    $region7: #{tpu_custom_call.1} parent=1 // loop_footer_branch
      %20 = sbr.rel target = $region3
    $region8: #{tpu_custom_call.1} parent=1 // loop_exit
      _
    %1112 = vsyncpa [#allocation3], 1
    %s1113 = scalar_lea.sflag [#allocation3], 1
    %1114 = vsyncpa %s1113, 1
    %1115 = vsyncpa [#allocation6], 1
    %s1116 = scalar_lea.sflag [#allocation6], 1
    %1117 = vsyncpa %s1116, 1
    %1118 = vsyncpa [#allocation9], 1
    %1119 = vsyncpa [#allocation4], 1
    %s1120 = scalar_lea.sflag [#allocation4], 1
    %1121 = vsyncpa %s1120, 1

</llo_original>
